<compile_context>
chip_gen: v6e
topology: v6e:2x2x1
jax: 0.10.0
libtpu: 0.0.40
codegen_flags: <defaults>
</compile_context>

<pallas_src>
import jax
import jax.numpy as jnp
from jax.experimental import pallas as pl
from jax.experimental.pallas import tpu as pltpu

BN_EPS = 1e-5
LANE = 128


def _round_up(x, m):
    return ((x + m - 1) // m) * m


def _pick_tile(dim, cap):
    """Largest multiple of 128 that divides `dim` (itself a 128-multiple) and is <= cap."""
    best = LANE
    t = LANE
    while t <= min(cap, dim):
        if dim % t == 0:
            best = t
        t += LANE
    return best


def mlp_kernel(x_ref, wt_ref, gb_ref, o_ref, acc_ref):
    # grid = (j: C_out tiles [parallel], k: C_in tiles [arbitrary / reduction])
    k = pl.program_id(1)

    @pl.when(k == 0)
    def _init():
        acc_ref[...] = jnp.zeros_like(acc_ref)

    # MXU matmul in native input dtype, f32 accumulation.
    acc_ref[...] += jnp.dot(x_ref[...], wt_ref[...],
                            preferred_element_type=jnp.float32)

    @pl.when(k == pl.num_programs(1) - 1)
    def _finalize():
        y = acc_ref[...]                                   # (N, TN) f32, full batch
        inv_n = 1.0 / y.shape[0]
        mean = jnp.sum(y, axis=0, keepdims=True) * inv_n   # one reduction pass
        e2 = jnp.sum(y * y, axis=0, keepdims=True) * inv_n
        var = e2 - mean * mean                             # biased var (training BN)
        inv_std = jax.lax.rsqrt(var + BN_EPS)
        gamma = gb_ref[0:1, :]
        beta = gb_ref[1:2, :]
        scale = gamma * inv_std                            # folded affine:
        shift = beta - mean * scale                        #   out = y*scale + shift
        o_ref[...] = jnp.maximum(y * scale + shift, 0.0).astype(o_ref.dtype)


def prepare_mlp_params(weight, gamma, beta):
    """One-time parameter prep, hoisted out of the per-call hot path.

    weight: (Cout, Cin) PyTorch nn.Linear layout; gamma/beta: (Cout,).
    Returns (wt, gb, cout): wt is (Cin, Cout_pad) row-major for the MXU,
    gb is a single (2, Cout_pad) gamma/beta slab, Cout padded to 128 for
    lane-dense output stores (padded cols use gamma=1, beta=0 -> output 0).
    """
    cout, cin = weight.shape
    cout_p = _round_up(cout, LANE)
    wt = jnp.zeros((cin, cout_p), weight.dtype).at[:, :cout].set(weight.T)
    g = jnp.ones((cout_p,), jnp.float32).at[:cout].set(gamma.astype(jnp.float32))
    b = jnp.zeros((cout_p,), jnp.float32).at[:cout].set(beta.astype(jnp.float32))
    gb = jnp.stack([g, b])
    return wt, gb, cout


def mlp_forward(x, wt, gb, cout, *, tn_cap=512, tk_cap=512):
    """x: (N, Cin); wt: (Cin, Cout_pad); gb: (2, Cout_pad)."""
    n, cin = x.shape
    cout_p = wt.shape[1]

    tn = _pick_tile(cout_p, tn_cap)
    # Tile the contraction only when Cin is 128-aligned; else one full-K step
    # (a full-extent last dim is always a legal block shape).
    tk = _pick_tile(cin, tk_cap) if cin % LANE == 0 else cin

    grid = (cout_p // tn, cin // tk)

    # double-buffered input/output slabs + f32 accumulator, 4B elements
    vmem_bytes = 4 * (2 * (n * tk + tk * tn + 2 * tn + n * tn) + n * tn)

    out_p = pl.pallas_call(
        mlp_kernel,
        out_shape=jax.ShapeDtypeStruct((n, cout_p), x.dtype),
        grid=grid,
        in_specs=[
            pl.BlockSpec((n, tk), lambda j, k: (0, k)),      # x: full batch, K slab
            pl.BlockSpec((tk, tn), lambda j, k: (k, j)),     # W^T slab
            pl.BlockSpec((2, tn), lambda j, k: (0, j)),      # [gamma; beta] slab
        ],
        out_specs=pl.BlockSpec((n, tn), lambda j, k: (0, j)),
        scratch_shapes=[pltpu.VMEM((n, tn), jnp.float32)],
        compiler_params=pltpu.CompilerParams(
            dimension_semantics=("parallel", "arbitrary"),
            vmem_limit_bytes=max(2 * vmem_bytes, 16 * 1024 * 1024),
        ),
    )(x, wt, gb)
    return out_p[:, :cout]


def mlp_reference(x, weight, gamma, beta):
    y = x @ weight.T
    mean = jnp.mean(y, axis=0, keepdims=True)
    var = jnp.mean((y - mean) ** 2, axis=0, keepdims=True)
    yhat = (y - mean) / jnp.sqrt(var + BN_EPS)
    return jnp.maximum(yhat * gamma[None, :] + beta[None, :], 0.0)


def _run_case(key, n, c_in, c_out, *, tn_cap=512, tk_cap=512):
    kx, kw, kg, kb = jax.random.split(key, 4)
    x = jax.random.normal(kx, (n, c_in), dtype=jnp.float32)
    weight = jax.random.normal(kw, (c_out, c_in), dtype=jnp.float32) * 0.1
    gamma = 1.0 + 0.1 * jax.random.normal(kg, (c_out,), dtype=jnp.float32)
    beta = 0.1 * jax.random.normal(kb, (c_out,), dtype=jnp.float32)

    wt, gb, cout = prepare_mlp_params(weight, gamma, beta)   # one-time prep
    out = mlp_forward(x, wt, gb, cout, tn_cap=tn_cap, tk_cap=tk_cap)
    out = jax.block_until_ready(out)

    ref = mlp_reference(x, weight, gamma, beta)
    assert out.shape == (n, c_out)
    assert jnp.allclose(out, ref, atol=1e-3, rtol=1e-3), "mismatch vs reference"
    return out


if __name__ == "__main__":
    key = jax.random.PRNGKey(0)
    k1, k2 = jax.random.split(key)

    # Small demo shape matching the PyTorch module (single K step, padded C_out).
    _run_case(k1, n=8, c_in=32, c_out=64)

    # Slightly larger shape exercising the tiled C_out / K-accumulation path.
    _run_case(k2, n=32, c_in=256, c_out=256, tn_cap=128, tk_cap=128)

    print("KERNEL_OK")
</pallas_src>

<mosaic_0001>
module attributes {stable_mosaic.version = 11 : i64} {
  func.func @mlp_kernel(%arg0: i32, %arg1: i32, %arg2: memref<8x32xf32, #tpu.memory_space<vmem>>, %arg3: memref<32x128xf32, #tpu.memory_space<vmem>>, %arg4: memref<2x128xf32, #tpu.memory_space<vmem>>, %arg5: memref<8x128xf32, #tpu.memory_space<vmem>>, %arg6: memref<8x128xf32, #tpu.memory_space<vmem>>) attributes {dimension_semantics = [#tpu.dimension_semantics<parallel>, #tpu.dimension_semantics<arbitrary>], iteration_bounds = array<i64: 1, 1>, scalar_prefetch = 0 : i64, scratch_operands = 1 : i64, tpu.core_type = #tpu.core_type<tc>, window_params = [{transform_indices = @transform_0, window_bounds = array<i64: 8, 32>}, {transform_indices = @transform_1, window_bounds = array<i64: 32, 128>}, {transform_indices = @transform_2, window_bounds = array<i64: 2, 128>}, {transform_indices = @transform_3, window_bounds = array<i64: 8, 128>}]} {
    %c0_i32 = arith.constant 0 : i32
    %0 = arith.cmpi eq, %arg1, %c0_i32 : i32
    %1 = arith.extui %0 : i1 to i32
    %c0_i32_0 = arith.constant 0 : i32
    %2 = arith.cmpi ne, %1, %c0_i32_0 : i32
    scf.if %2 {
      %cst_10 = arith.constant 0.000000e+00 : f32
      %12 = vector.broadcast %cst_10 : f32 to vector<8x128xf32>
      %c0_11 = arith.constant 0 : index
      %c0_12 = arith.constant 0 : index
      %13 = vector.load %arg6[%c0_11, %c0_12] : memref<8x128xf32, #tpu.memory_space<vmem>>, vector<8x128xf32>
      tpu.vector_store %arg6[%c0_11, %c0_12], %12 {strides = array<i32>} : memref<8x128xf32, #tpu.memory_space<vmem>>, vector<8x128xf32>,
    } else {
    }
    %c0 = arith.constant 0 : index
    %c0_1 = arith.constant 0 : index
    %3 = vector.load %arg6[%c0, %c0_1] : memref<8x128xf32, #tpu.memory_space<vmem>>, vector<8x128xf32>
    %c0_2 = arith.constant 0 : index
    %c0_3 = arith.constant 0 : index
    %4 = vector.load %arg2[%c0_2, %c0_3] : memref<8x32xf32, #tpu.memory_space<vmem>>, vector<8x32xf32>
    %c0_4 = arith.constant 0 : index
    %c0_5 = arith.constant 0 : index
    %5 = vector.load %arg3[%c0_4, %c0_5] : memref<32x128xf32, #tpu.memory_space<vmem>>, vector<32x128xf32>
    %cst = arith.constant dense<0.000000e+00> : vector<8x128xf32>
    %6 = tpu.matmul %4, %5, %cst {dimension_numbers = #tpu.dot_dimension_numbers<[1], [0], [0], [1], [0, 0, 1, 1], [], []>} : vector<8x32xf32>, vector<32x128xf32>, vector<8x128xf32> -> vector<8x128xf32>
    %7 = arith.addf %3, %6 : vector<8x128xf32>
    %c0_6 = arith.constant 0 : index
    %c0_7 = arith.constant 0 : index
    %8 = vector.load %arg6[%c0_6, %c0_7] : memref<8x128xf32, #tpu.memory_space<vmem>>, vector<8x128xf32>
    tpu.vector_store %arg6[%c0_6, %c0_7], %7 {strides = array<i32>} : memref<8x128xf32, #tpu.memory_space<vmem>>, vector<8x128xf32>,
    %c0_i32_8 = arith.constant 0 : i32
    %9 = arith.cmpi eq, %arg1, %c0_i32_8 : i32
    %10 = arith.extui %9 : i1 to i32
    %c0_i32_9 = arith.constant 0 : i32
    %11 = arith.cmpi ne, %10, %c0_i32_9 : i32
    scf.if %11 {
      %c0_10 = arith.constant 0 : index
      %c0_11 = arith.constant 0 : index
      %12 = vector.load %arg6[%c0_10, %c0_11] : memref<8x128xf32, #tpu.memory_space<vmem>>, vector<8x128xf32>
      %cst_12 = arith.constant dense<0.000000e+00> : vector<128xf32>
      %13 = vector.multi_reduction <add>, %12, %cst_12 [0] : vector<8x128xf32> to vector<128xf32>
      %14 = vector.shape_cast %13 : vector<128xf32> to vector<1x128xf32>
      %cst_13 = arith.constant 1.250000e-01 : f32
      %15 = vector.broadcast %cst_13 : f32 to vector<1x128xf32>
      %16 = arith.mulf %14, %15 : vector<1x128xf32>
      %17 = arith.mulf %12, %12 : vector<8x128xf32>
      %cst_14 = arith.constant dense<0.000000e+00> : vector<128xf32>
      %18 = vector.multi_reduction <add>, %17, %cst_14 [0] : vector<8x128xf32> to vector<128xf32>
      %19 = vector.shape_cast %18 : vector<128xf32> to vector<1x128xf32>
      %cst_15 = arith.constant 1.250000e-01 : f32
      %20 = vector.broadcast %cst_15 : f32 to vector<1x128xf32>
      %21 = arith.mulf %19, %20 : vector<1x128xf32>
      %22 = arith.mulf %16, %16 : vector<1x128xf32>
      %23 = arith.subf %21, %22 : vector<1x128xf32>
      %cst_16 = arith.constant 9.99999974E-6 : f32
      %24 = vector.broadcast %cst_16 : f32 to vector<1x128xf32>
      %25 = arith.addf %23, %24 : vector<1x128xf32>
      %26 = math.rsqrt %25 : vector<1x128xf32>
      %c0_17 = arith.constant 0 : index
      %c0_18 = arith.constant 0 : index
      %27 = vector.load %arg4[%c0_17, %c0_18] : memref<2x128xf32, #tpu.memory_space<vmem>>, vector<1x128xf32>
      %c1 = arith.constant 1 : index
      %c0_19 = arith.constant 0 : index
      %28 = vector.load %arg4[%c1, %c0_19] : memref<2x128xf32, #tpu.memory_space<vmem>>, vector<1x128xf32>
      %29 = arith.mulf %27, %26 : vector<1x128xf32>
      %30 = arith.mulf %16, %29 : vector<1x128xf32>
      %31 = arith.subf %28, %30 : vector<1x128xf32>
      %32 = vector.broadcast %29 : vector<1x128xf32> to vector<8x128xf32>
      %33 = arith.mulf %12, %32 : vector<8x128xf32>
      %34 = vector.broadcast %31 : vector<1x128xf32> to vector<8x128xf32>
      %35 = arith.addf %33, %34 : vector<8x128xf32>
      %cst_20 = arith.constant 0.000000e+00 : f32
      %36 = vector.broadcast %cst_20 : f32 to vector<8x128xf32>
      %37 = arith.maximumf %35, %36 : vector<8x128xf32>
      %c0_21 = arith.constant 0 : index
      %c0_22 = arith.constant 0 : index
      %38 = vector.load %arg5[%c0_21, %c0_22] : memref<8x128xf32, #tpu.memory_space<vmem>>, vector<8x128xf32>
      tpu.vector_store %arg5[%c0_21, %c0_22], %37 {strides = array<i32>} : memref<8x128xf32, #tpu.memory_space<vmem>>, vector<8x128xf32>,
    } else {
    }
    return
  }
  func.func @transform_0(%arg0: i32, %arg1: i32) -> (i32, i32) {
    %c0_i32 = arith.constant 0 : i32
    %c0_i32_0 = arith.constant 0 : i32
    return %c0_i32, %arg1 : i32, i32
  }
  func.func @transform_1(%arg0: i32, %arg1: i32) -> (i32, i32) {
    %c0_i32 = arith.constant 0 : i32
    return %arg1, %arg0 : i32, i32
  }
  func.func @transform_2(%arg0: i32, %arg1: i32) -> (i32, i32) {
    %c0_i32 = arith.constant 0 : i32
    %c0_i32_0 = arith.constant 0 : i32
    return %c0_i32, %arg0 : i32, i32
  }
  func.func @transform_3(%arg0: i32, %arg1: i32) -> (i32, i32) {
    %c0_i32 = arith.constant 0 : i32
    %c0_i32_0 = arith.constant 0 : i32
    return %c0_i32, %arg0 : i32, i32
  }
}

</mosaic_0001>

<llo_original>
// kernel: tpu_custom_call.1
$region0: #{tpu_custom_call.1}
  #allocation0 [shape = 'u32[]', space=smem, size = 0x4, offset = 0x4, fixed_abs, tag = 'smem constant byte address 0x4 - core index']
  #allocation1 [shape = 'u32[144,128]{1,0:T(1,128)}', space=vmem, size = 0x12000, scoped, tag = 'internal scratch']
  #allocation2 [shape = 'f32[8,128]{1,0:T(8,128)}', space=vmem, size = 0x1000, scoped, tag = 'scratch operand']
  %s0 = inlined_call_operand.hbm [shape: f32[8,32], index: 0, kind: input, shape index: {}]
  %s1 = inlined_call_operand.hbm [shape: f32[32,128], index: 1, kind: input, shape index: {}]
  %s2 = inlined_call_operand.vmem [shape: f32[2,128], index: 2, kind: input, shape index: {}]
  %s3 = inlined_call_operand.hbm [shape: f32[8,128], index: 3, kind: output, shape index: {}]
  %s4 = sld [smem:[#allocation0]]
  $region38: #{tpu_custom_call.1} parent=0
    _
  %s6 = ssub.s32 1, %s4
  %s7 = scalar_select 0, %s6, %s4
  $region1: #{tpu_custom_call.1} parent=0
    #allocation3 [shape = 'u8[4096]{0}', space=vmem, size = 0x1000, scoped, tag = 'input window, operand 0, single buffered']
    #allocation4 [shape = 's32[1]{0}', space=sflag, size = 0x4, scoped, tag = 'scoped memory for tpu_custom_call.1']
    #allocation5 [shape = 's32[1]{0}', space=sflag, size = 0x4, scoped, tag = 'scoped memory for tpu_custom_call.1']
    #allocation6 [shape = 'u8[16384]{0}', space=vmem, size = 0x4000, scoped, tag = 'input window, operand 1, single buffered']
    #allocation7 [shape = 's32[1]{0}', space=sflag, size = 0x4, scoped, tag = 'scoped memory for tpu_custom_call.1']
    #allocation8 [shape = 'u8[4096]{0}', space=vmem, size = 0x1000, scoped, tag = 'output window, operand 0, single buffered']
    %8 = vsyncpa [#allocation4], 0
    %9 = vsyncpa [#allocation7], 0
    %10 = vsyncpa [#allocation5], 0
    // Predicated region
    $region2: #{tpu_custom_call.1} parent=1 // pred_check
      _
    $region3: #{tpu_custom_call.1} parent=1 // pred_check_branch
      %12 = sbr.rel (0) target = $region5
    $region4: #{tpu_custom_call.1} parent=1 // pred_region
      %s14 = ssub.s32 128, 128
      %15 = vsyncadd [#allocation4], %s14
      %s17 = sshll.u32 [#allocation3], 4
      %s18 = int_to_ptr.vmem [resolvable:$true] %s17
      %20 = dma.hbm_to_vmem [thread:$0]  %s0, 128, %s18, [#allocation4]
    $region5: #{tpu_custom_call.1} parent=1 // pred_fallthru
      _
    // Predicated region
    $region6: #{tpu_custom_call.1} parent=1 // pred_check
      _
    $region7: #{tpu_custom_call.1} parent=1 // pred_check_branch
      %22 = sbr.rel (0) target = $region9
    $region8: #{tpu_custom_call.1} parent=1 // pred_region
      %s24 = ssub.s32 512, 512
      %25 = vsyncadd [#allocation7], %s24
      %s26 = sshll.u32 [#allocation6], 4
      %s27 = int_to_ptr.vmem [resolvable:$true] %s26
      %32 = dma.hbm_to_vmem [thread:$0]  %s1, 512, %s27, [#allocation7], 128, 128, 8
    $region9: #{tpu_custom_call.1} parent=1 // pred_fallthru
      _
    // Predicated region
    $region10: #{tpu_custom_call.1} parent=1 // pred_check
      _
    $region11: #{tpu_custom_call.1} parent=1 // pred_check_branch
      %34 = sbr.rel (0) target = $region13
    $region12: #{tpu_custom_call.1} parent=1 // pred_region
      _
    $region13: #{tpu_custom_call.1} parent=1 // pred_fallthru
      _
    // Predicated region
    $region14: #{tpu_custom_call.1} parent=1 // pred_check
      _
    $region15: #{tpu_custom_call.1} parent=1 // pred_check_branch
      %36 = sbr.rel (0) target = $region17
    $region16: #{tpu_custom_call.1} parent=1 // pred_region
      %37 = dma.done [#allocation4], 128
    $region17: #{tpu_custom_call.1} parent=1 // pred_fallthru
      _
    // Predicated region
    $region18: #{tpu_custom_call.1} parent=1 // pred_check
      _
    $region19: #{tpu_custom_call.1} parent=1 // pred_check_branch
      %39 = sbr.rel (0) target = $region21
    $region20: #{tpu_custom_call.1} parent=1 // pred_region
      %40 = dma.done [#allocation7], 512
    $region21: #{tpu_custom_call.1} parent=1 // pred_fallthru
      _
    %p41 = scmp.eq.s32.totalorder 0, 0
    // Predicated region
    $region22: #{tpu_custom_call.1} parent=1 // pred_check
      %p42 = pneg %p41
    $region23: #{tpu_custom_call.1} parent=1 // pred_check_branch
      %44 = sbr.rel (%p42) target = $region25
    $region24: #{tpu_custom_call.1} parent=1 // pred_region
      %45 = vst [vmem:[#allocation2] sm:$0xff] 0.0
    $region25: #{tpu_custom_call.1} parent=1 // pred_fallthru
      _
    %v46 = vld [vmem:[#allocation2] sm:$0xff]
    %v47 = vld [vmem:[#allocation3] sm:$0xff]
    %v48 = vld [vmem:[#allocation6] sm:$0xff]
    %v49 = vld [vmem:[#allocation6 + $0x8] sm:$0xff]
    %v50 = vld [vmem:[#allocation6 + $0x10] sm:$0xff]
    %v51 = vld [vmem:[#allocation6 + $0x18] sm:$0xff]
    %vm52 = vcmask 261120
    %v54 = vsel %vm52, %v47, 0
    %56 = vmatprep.subr.mxu0 0.0
    %57 = vmatpush1.msra.mxu0 0.0
    %58 = vmatprep.subr.mxu0 0.0
    %59 = vmatpush1.msra.mxu0 0.0
    %60 = vmatprep.subr.mxu0 0.0
    %61 = vmatpush1.msra.mxu0 0.0
    %62 = vmatprep.subr.mxu0 0.0
    %63 = vmatpush1.msra.mxu0 0.0
    %64 = vmatprep.subr.mxu0 0.0
    %65 = vmatpush1.msra.mxu0 0.0
    %66 = vmatprep.subr.mxu0 0.0
    %67 = vmatpush1.msra.mxu0 0.0
    %68 = vmatprep.subr.mxu0 0.0
    %69 = vmatpush1.msra.mxu0 0.0
    %70 = vmatprep.subr.mxu0 0.0
    %71 = vmatpush1.msra.mxu0 0.0
    %72 = vmatprep.subr.mxu0 0.0
    %73 = vmatpush1.msra.mxu0 0.0
    %74 = vmatprep.subr.mxu0 0.0
    %75 = vmatpush1.msra.mxu0 0.0
    %76 = vmatprep.subr.mxu0 0.0
    %77 = vmatpush1.msra.mxu0 0.0
    %78 = vmatprep.subr.mxu0 0.0
    %79 = vmatpush1.msra.mxu0 0.0
    %80 = vmatprep.subr.mxu0 0.0
    %81 = vmatpush1.msra.mxu0 %v51
    %82 = vmatprep.subr.mxu0 0.0
    %83 = vmatpush1.msra.mxu0 %v50
    %84 = vmatprep.subr.mxu0 0.0
    %85 = vmatpush1.msra.mxu0 %v49
    %86 = vmatprep.subr.mxu0 0.0
    %87 = vmatpush1.msra.mxu0 %v48
    %88 = vmatprep.subr.mxu0 0.0
    %89 = vmatpush2.msra.mxu0 0.0
    %90 = vmatprep.subr.mxu0 0.0
    %91 = vmatpush2.msra.mxu0 0.0
    %92 = vmatprep.subr.mxu0 0.0
    %93 = vmatpush2.msra.mxu0 0.0
    %94 = vmatprep.subr.mxu0 0.0
    %95 = vmatpush2.msra.mxu0 0.0
    %96 = vmatprep.subr.mxu0 0.0
    %97 = vmatpush2.msra.mxu0 0.0
    %98 = vmatprep.subr.mxu0 0.0
    %99 = vmatpush2.msra.mxu0 0.0
    %100 = vmatprep.subr.mxu0 0.0
    %101 = vmatpush2.msra.mxu0 0.0
    %102 = vmatprep.subr.mxu0 0.0
    %103 = vmatpush2.msra.mxu0 0.0
    %104 = vmatprep.subr.mxu0 0.0
    %105 = vmatpush2.msra.mxu0 0.0
    %106 = vmatprep.subr.mxu0 0.0
    %107 = vmatpush2.msra.mxu0 0.0
    %108 = vmatprep.subr.mxu0 0.0
    %109 = vmatpush2.msra.mxu0 0.0
    %110 = vmatprep.subr.mxu0 0.0
    %111 = vmatpush2.msra.mxu0 0.0
    %112 = vmatprep.subr.mxu0 0.0
    %113 = vmatpush2.msra.mxu0 0.0
    %114 = vmatprep.subr.mxu0 0.0
    %115 = vmatpush2.msra.mxu0 0.0
    %116 = vmatprep.subr.mxu0 0.0
    %117 = vmatpush2.msra.mxu0 0.0
    %118 = vmatprep.subr.mxu0 0.0
    %119 = vmatpush2.msra.mxu0 0.0
    %120 = vmatprep.mubr.f32.mxu0 0.0
    %121 = vmatmul.mubr.f32.gmra.mxu0 %v54
    %v122 = vpop.f32.mrf.mxu0
    %v123 = vadd.f32 0.0, %v122
    %v124 = vpop.f32.mrf.mxu0
    %125 = vdwg.mxu0
    %v126 = vadd.f32 %v46, %v123
    %127 = vst [vmem:[#allocation2] sm:$0xff] %v126
    // Predicated region
    $region26: #{tpu_custom_call.1} parent=1 // pred_check
      %p128 = pneg %p41
    $region27: #{tpu_custom_call.1} parent=1 // pred_check_branch
      %130 = sbr.rel (%p128) target = $region29
    $region28: #{tpu_custom_call.1} parent=1 // pred_region
      %v131 = vld [vmem:[#allocation2] sm:$0xff]
      %v132 = vrot.slane %v131, 4
      %v133 = vadd.f32 %v131, %v132
      %v134 = vrot.slane %v133, 2
      %v135 = vadd.f32 %v133, %v134
      %v136 = vrot.slane %v135, 1
      %v137 = vadd.f32 %v135, %v136
      %v138 = vmul.f32 %v137, 0.125
      %v139 = vmul.f32 %v131, %v131
      %v140 = vrot.slane %v139, 4
      %v141 = vadd.f32 %v139, %v140
      %v142 = vrot.slane %v141, 2
      %v143 = vadd.f32 %v141, %v142
      %v144 = vrot.slane %v143, 1
      %v145 = vadd.f32 %v143, %v144
      %v146 = vmul.f32 %v145, 0.125
      %v147 = vmul.f32 %v138, %v138
      %v148 = vsub.f32 %v146, %v147
      %v149 = vadd.f32 %v148, 1e-05
      %v150 = vrsqrt.pop %v149
      %v151 = vld [vmem:[%s2] sm:$0x1]
      %v152 = vld [vmem:[%s2 + $0x1] sm:$0x1]
      %v153 = vmul.f32 %v151, %v150
      %v154 = vmul.f32 %v138, %v153
      %v155 = vsub.f32 %v152, %v154
      %v156 = vlaneseq
      %v157 = vshrl.u32 %v156, 7
      %v158 = vsub.s32 0, %v157
      %v159 = vrot.slane %v153, %v158
      %v160 = vmul.f32 %v131, %v159
      %v161 = vlaneseq
      %v162 = vshrl.u32 %v161, 7
      %v163 = vsub.s32 0, %v162
      %v164 = vrot.slane %v155, %v163
      %v165 = vadd.f32 %v160, %v164
      %v166 = vmax.f32 %v165, 0.0
      %167 = vst [vmem:[#allocation8] sm:$0xff] %v166
    $region29: #{tpu_custom_call.1} parent=1 // pred_fallthru
      _
    // Predicated region
    $region30: #{tpu_custom_call.1} parent=1 // pred_check
      _
    $region31: #{tpu_custom_call.1} parent=1 // pred_check_branch
      %169 = sbr.rel (0) target = $region33
    $region32: #{tpu_custom_call.1} parent=1 // pred_region
      %s171 = ssub.s32 128, 128
      %172 = vsyncadd [#allocation5], %s171
      %s174 = sshll.u32 [#allocation8], 4
      %s175 = int_to_ptr.vmem [resolvable:$true] %s174
      %177 = dma.vmem_to_hbm [thread:$0]  %s175, 128, %s3, [#allocation5]
    $region33: #{tpu_custom_call.1} parent=1 // pred_fallthru
      _
    // Predicated region
    $region34: #{tpu_custom_call.1} parent=1 // pred_check
      _
    $region35: #{tpu_custom_call.1} parent=1 // pred_check_branch
      %179 = sbr.rel (0) target = $region37
    $region36: #{tpu_custom_call.1} parent=1 // pred_region
      %180 = dma.done [#allocation5], 128
    $region37: #{tpu_custom_call.1} parent=1 // pred_fallthru
      _
    %181 = vsyncpa [#allocation4], 1
    %182 = vsyncpa [#allocation7], 1
    %183 = vsyncpa [#allocation5], 1

</llo_original>
